<compile_context>
chip_gen: v7x
topology: tpu7x:2x2x1
jax: 0.10.0
libtpu: 0.0.40
codegen_flags: <defaults>
</compile_context>

<pallas_src>
import jax
import jax.numpy as jnp
from jax.experimental import pallas as pl
from jax.experimental.pallas import tpu as pltpu


# ---------------- Pass 1: per-row (= per (n, c)) sum and sum-of-squares ----------

def _stats_kernel(x_ref, sum_ref, sq_ref):
    j = pl.program_id(1)                       # HW-tile axis (reduction, last)

    @pl.when(j == 0)
    def _():
        sum_ref[...] = jnp.zeros_like(sum_ref)
        sq_ref[...] = jnp.zeros_like(sq_ref)

    x = x_ref[...].astype(jnp.float32)         # (tr, th); cast per tile, f32 accum
    sum_ref[...] += jnp.sum(x, axis=-1, keepdims=True)
    sq_ref[...] += jnp.sum(x * x, axis=-1, keepdims=True)


# ---------------- Pass 2: y = x * scale + shift (streaming elementwise) ----------

def _apply_kernel(scale_ref, shift_ref, x_ref, y_ref):
    x = x_ref[...].astype(jnp.float32)         # (tr, th)
    y = x * scale_ref[...] + shift_ref[...]    # (tr, 1) broadcasts over lanes
    y_ref[...] = y.astype(y_ref.dtype)


def _pick_tile(dim, candidates):
    """Largest candidate that evenly divides `dim`, else the full dim."""
    for c in candidates:
        if c <= dim and dim % c == 0:
            return c
    return dim


def switch_norm(x, weight, bias, mean_weight, var_weight,
                running_mean, running_var, *, momentum=0.9, eps=1e-5):
    """Training-mode SwitchNorm forward. Returns (y, new_running_mean, new_running_var)."""
    N, C, H, W = x.shape
    hw = H * W
    R = N * C
    x2 = x.reshape(R, hw)                      # lane-dense 2-D view, spatial on lanes

    # Tile sizes: lane tile a multiple of 128 (or full HW), row tile a multiple of 8
    # (or full N*C).  Max f32 buffer = 128 * 2048 * 4B = 1 MiB -> fits every VMEM.
    th = _pick_tile(hw, (2048, 1024, 512, 256, 128))
    tr = _pick_tile(R, (128, 64, 32, 16, 8))
    grid = (R // tr, hw // th)

    cparams_stats = pltpu.CompilerParams(
        dimension_semantics=("parallel", "arbitrary"),
        vmem_limit_bytes=32 * 1024 * 1024)
    cparams_apply = pltpu.CompilerParams(
        dimension_semantics=("parallel", "parallel"),
        vmem_limit_bytes=32 * 1024 * 1024)

    # ---- Pass 1: per-row sum / sum-of-squares (reduction axis is the last grid axis).
    sums, sqs = pl.pallas_call(
        _stats_kernel,
        out_shape=(jax.ShapeDtypeStruct((R, 1), jnp.float32),
                   jax.ShapeDtypeStruct((R, 1), jnp.float32)),
        grid=grid,
        in_specs=[pl.BlockSpec((tr, th), lambda i, j: (i, j))],
        out_specs=(pl.BlockSpec((tr, 1), lambda i, j: (i, 0)),
                   pl.BlockSpec((tr, 1), lambda i, j: (i, 0))),
        compiler_params=cparams_stats,
    )(x2)

    # ---- Tiny JAX glue on (N, C) stats: all SwitchNorm mixing + rsqrt + affine fold.
    s = sums.reshape(N, C)
    ss = sqs.reshape(N, C)
    mean_in = s / hw
    # PyTorch x.var(-1) is unbiased (divide by HW-1); HW == 1 gives inf/nan like torch.
    # Note: sum-of-squares form accumulated in f32; diff-based form is more stable but
    # needs two sweeps.  Keep as-is intentionally.
    var_in = (ss - hw * mean_in * mean_in) / (hw - 1.0)

    temp = var_in + mean_in * mean_in
    mean_ln = jnp.mean(mean_in, axis=1, keepdims=True)             # (N, 1)
    var_ln = jnp.mean(temp, axis=1, keepdims=True) - mean_ln * mean_ln
    mean_bn = jnp.mean(mean_in, axis=0, keepdims=True)             # (1, C)
    var_bn = jnp.mean(temp, axis=0, keepdims=True) - mean_bn * mean_bn

    mw = jax.nn.softmax(mean_weight.astype(jnp.float32), axis=0)
    vw = jax.nn.softmax(var_weight.astype(jnp.float32), axis=0)

    mean = mw[0] * mean_in + mw[1] * mean_ln + mw[2] * mean_bn     # (N, C)
    var = vw[0] * var_in + vw[1] * var_ln + vw[2] * var_bn         # (N, C)

    inv_std = jax.lax.rsqrt(var + eps)
    gamma = weight.astype(jnp.float32)[None, :]                    # (1, C)
    beta = bias.astype(jnp.float32)[None, :]
    scale = (gamma * inv_std).reshape(R, 1)                        # per-(n,c) scale
    shift = (beta - mean * gamma * inv_std).reshape(R, 1)          # per-(n,c) shift

    # ---- Pass 2: stream y = x * scale + shift.
    y2 = pl.pallas_call(
        _apply_kernel,
        out_shape=jax.ShapeDtypeStruct((R, hw), x.dtype),
        grid=grid,
        in_specs=[pl.BlockSpec((tr, 1), lambda i, j: (i, 0)),
                  pl.BlockSpec((tr, 1), lambda i, j: (i, 0)),
                  pl.BlockSpec((tr, th), lambda i, j: (i, j))],
        out_specs=pl.BlockSpec((tr, th), lambda i, j: (i, j)),
        compiler_params=cparams_apply,
    )(scale, shift, x2)

    y = y2.reshape(N, C, H, W)

    # Running-buffer update semantics of F.switch_norm (training=True).
    # (returned, since JAX has no in-place module buffers)
    new_rm = running_mean * momentum + (1.0 - momentum) * mean_bn.reshape(C)
    new_rv = running_var * momentum + (1.0 - momentum) * var_bn.reshape(C)
    return y, new_rm, new_rv


if __name__ == "__main__":
    key = jax.random.PRNGKey(0)
    N, C, H, W = 2, 4, 16, 16

    x = jax.random.normal(key, (N, C, H, W), dtype=jnp.float32)

    # Deterministic parameter init (shapes from __init__; affine=True).
    weight = 1.0 + 0.1 * jnp.arange(C, dtype=jnp.float32)
    bias = 0.01 * jnp.arange(C, dtype=jnp.float32)
    mean_weight = jnp.ones((3,), dtype=jnp.float32)
    var_weight = jnp.ones((3,), dtype=jnp.float32)
    running_mean = jnp.zeros((C,), dtype=jnp.float32)
    running_var = jnp.ones((C,), dtype=jnp.float32)

    y, new_rm, new_rv = switch_norm(
        x, weight, bias, mean_weight, var_weight,
        running_mean, running_var, momentum=0.9, eps=1e-5)
    jax.block_until_ready((y, new_rm, new_rv))

    # Pure-JAX reference (same math as torchtoolbox F.switch_norm, training mode).
    x3 = x.reshape(N, C, H * W).astype(jnp.float32)
    mean_in = x3.mean(-1, keepdims=True)
    var_in = x3.var(-1, ddof=1, keepdims=True)
    temp = var_in + mean_in ** 2
    mean_ln = mean_in.mean(1, keepdims=True)
    var_ln = temp.mean(1, keepdims=True) - mean_ln ** 2
    mean_bn = mean_in.mean(0, keepdims=True)
    var_bn = temp.mean(0, keepdims=True) - mean_bn ** 2
    mw = jax.nn.softmax(mean_weight)
    vw = jax.nn.softmax(var_weight)
    mean_r = mw[0] * mean_in + mw[1] * mean_ln + mw[2] * mean_bn
    var_r = vw[0] * var_in + vw[1] * var_ln + vw[2] * var_bn
    y_ref = ((x3 - mean_r) / jnp.sqrt(var_r + 1e-5)
             * weight.reshape(1, C, 1) + bias.reshape(1, C, 1)).reshape(N, C, H, W)

    assert jnp.allclose(y, y_ref, atol=1e-4, rtol=1e-4), "kernel/reference mismatch"

    print("KERNEL_OK")
</pallas_src>

<mosaic_0001>
module attributes {stable_mosaic.version = 11 : i64} {
  func.func @_stats_kernel(%arg0: i32, %arg1: i32, %arg2: memref<8x256xf32, #tpu.memory_space<vmem>>, %arg3: memref<8x1xf32, #tpu.memory_space<vmem>>, %arg4: memref<8x1xf32, #tpu.memory_space<vmem>>) attributes {dimension_semantics = [#tpu.dimension_semantics<parallel>, #tpu.dimension_semantics<arbitrary>], iteration_bounds = array<i64: 1, 1>, scalar_prefetch = 0 : i64, scratch_operands = 0 : i64, tpu.core_type = #tpu.core_type<tc>, window_params = [{transform_indices = @transform_0, window_bounds = array<i64: 8, 256>}, {transform_indices = @transform_1, window_bounds = array<i64: 8, 1>}, {transform_indices = @transform_2, window_bounds = array<i64: 8, 1>}]} {
    %c0_i32 = arith.constant 0 : i32
    %0 = arith.cmpi eq, %arg1, %c0_i32 : i32
    %1 = arith.extui %0 : i1 to i32
    %c0_i32_0 = arith.constant 0 : i32
    %2 = arith.cmpi ne, %1, %c0_i32_0 : i32
    scf.if %2 {
      %cst_11 = arith.constant 0.000000e+00 : f32
      %15 = vector.broadcast %cst_11 : f32 to vector<8x1xf32>
      %c0_12 = arith.constant 0 : index
      %c0_13 = arith.constant 0 : index
      %16 = vector.load %arg3[%c0_12, %c0_13] : memref<8x1xf32, #tpu.memory_space<vmem>>, vector<8x1xf32>
      tpu.vector_store %arg3[%c0_12, %c0_13], %15 {strides = array<i32>} : memref<8x1xf32, #tpu.memory_space<vmem>>, vector<8x1xf32>,
      %cst_14 = arith.constant 0.000000e+00 : f32
      %17 = vector.broadcast %cst_14 : f32 to vector<8x1xf32>
      %c0_15 = arith.constant 0 : index
      %c0_16 = arith.constant 0 : index
      %18 = vector.load %arg4[%c0_15, %c0_16] : memref<8x1xf32, #tpu.memory_space<vmem>>, vector<8x1xf32>
      tpu.vector_store %arg4[%c0_15, %c0_16], %17 {strides = array<i32>} : memref<8x1xf32, #tpu.memory_space<vmem>>, vector<8x1xf32>,
    } else {
    }
    %c0 = arith.constant 0 : index
    %c0_1 = arith.constant 0 : index
    %3 = vector.load %arg2[%c0, %c0_1] : memref<8x256xf32, #tpu.memory_space<vmem>>, vector<8x256xf32>
    %c0_2 = arith.constant 0 : index
    %c0_3 = arith.constant 0 : index
    %4 = vector.load %arg3[%c0_2, %c0_3] : memref<8x1xf32, #tpu.memory_space<vmem>>, vector<8x1xf32>
    %cst = arith.constant dense<0.000000e+00> : vector<8xf32>
    %5 = vector.multi_reduction <add>, %3, %cst [1] : vector<8x256xf32> to vector<8xf32>
    %6 = vector.shape_cast %5 : vector<8xf32> to vector<8x1xf32>
    %7 = arith.addf %4, %6 : vector<8x1xf32>
    %c0_4 = arith.constant 0 : index
    %c0_5 = arith.constant 0 : index
    %8 = vector.load %arg3[%c0_4, %c0_5] : memref<8x1xf32, #tpu.memory_space<vmem>>, vector<8x1xf32>
    tpu.vector_store %arg3[%c0_4, %c0_5], %7 {strides = array<i32>} : memref<8x1xf32, #tpu.memory_space<vmem>>, vector<8x1xf32>,
    %c0_6 = arith.constant 0 : index
    %c0_7 = arith.constant 0 : index
    %9 = vector.load %arg4[%c0_6, %c0_7] : memref<8x1xf32, #tpu.memory_space<vmem>>, vector<8x1xf32>
    %10 = arith.mulf %3, %3 : vector<8x256xf32>
    %cst_8 = arith.constant dense<0.000000e+00> : vector<8xf32>
    %11 = vector.multi_reduction <add>, %10, %cst_8 [1] : vector<8x256xf32> to vector<8xf32>
    %12 = vector.shape_cast %11 : vector<8xf32> to vector<8x1xf32>
    %13 = arith.addf %9, %12 : vector<8x1xf32>
    %c0_9 = arith.constant 0 : index
    %c0_10 = arith.constant 0 : index
    %14 = vector.load %arg4[%c0_9, %c0_10] : memref<8x1xf32, #tpu.memory_space<vmem>>, vector<8x1xf32>
    tpu.vector_store %arg4[%c0_9, %c0_10], %13 {strides = array<i32>} : memref<8x1xf32, #tpu.memory_space<vmem>>, vector<8x1xf32>,
    return
  }
  func.func @transform_0(%arg0: i32, %arg1: i32) -> (i32, i32) {
    %c0_i32 = arith.constant 0 : i32
    return %arg0, %arg1 : i32, i32
  }
  func.func @transform_1(%arg0: i32, %arg1: i32) -> (i32, i32) {
    %c0_i32 = arith.constant 0 : i32
    %c0_i32_0 = arith.constant 0 : i32
    return %arg0, %c0_i32 : i32, i32
  }
  func.func @transform_2(%arg0: i32, %arg1: i32) -> (i32, i32) {
    %c0_i32 = arith.constant 0 : i32
    %c0_i32_0 = arith.constant 0 : i32
    return %arg0, %c0_i32 : i32, i32
  }
}

</mosaic_0001>

<llo_original>
// kernel: tpu_custom_call.1
$region0: #{tpu_custom_call.1}
  #allocation0 [shape = 'u32[]', space=smem, size = 0x4, offset = 0x4, fixed_abs, tag = 'smem constant byte address 0x4 - core index']
  #allocation1 [shape = 'u32[144,128]{1,0:T(1,128)}', space=vmem, size = 0x12000, scoped, tag = 'internal scratch']
  %s0 = inlined_call_operand.hbm [shape: f32[8,256], index: 0, kind: input, shape index: {}]
  %s1 = inlined_call_operand.vmem [shape: f32[8,1], index: 1, kind: output, shape index: {0}]
  %s2 = inlined_call_operand.vmem [shape: f32[8,1], index: 2, kind: output, shape index: {1}]
  %3 = xla_tuple %s1, %s2
  %s4 = sld [smem:[#allocation0]]
  $region30: #{tpu_custom_call.1} parent=0
    _
  %s6 = ssub.s32 1, %s4
  %s7 = scalar_select 0, %s6, %s4
  $region1: #{tpu_custom_call.1} parent=0
    #allocation2 [shape = 'u8[8192]{0}', space=vmem, size = 0x2000, scoped, tag = 'input window, operand 0, single buffered']
    #allocation3 [shape = 's32[1]{0}', space=sflag, size = 0x4, scoped, tag = 'scoped memory for tpu_custom_call.1']
    %8 = vsyncpa [#allocation3], 0
    // Predicated region
    $region2: #{tpu_custom_call.1} parent=1 // pred_check
      _
    $region3: #{tpu_custom_call.1} parent=1 // pred_check_branch
      %10 = sbr.rel (0) target = $region5
    $region4: #{tpu_custom_call.1} parent=1 // pred_region
      %s12 = ssub.s32 256, 256
      %13 = vsyncadd [#allocation3], %s12
      %s15 = sshll.u32 [#allocation2], 4
      %s16 = int_to_ptr.vmem [resolvable:$true] %s15
      %18 = dma.hbm_to_vmem [thread:$0]  %s0, 256, %s16, [#allocation3]
    $region5: #{tpu_custom_call.1} parent=1 // pred_fallthru
      _
    // Predicated region
    $region6: #{tpu_custom_call.1} parent=1 // pred_check
      _
    $region7: #{tpu_custom_call.1} parent=1 // pred_check_branch
      %20 = sbr.rel (0) target = $region9
    $region8: #{tpu_custom_call.1} parent=1 // pred_region
      %21 = dma.done [#allocation3], 256
    $region9: #{tpu_custom_call.1} parent=1 // pred_fallthru
      _
    %p22 = scmp.eq.s32.totalorder 0, 0
    // Predicated region
    $region10: #{tpu_custom_call.1} parent=1 // pred_check
      %p23 = pneg %p22
    $region11: #{tpu_custom_call.1} parent=1 // pred_check_branch
      %25 = sbr.rel (%p23) target = $region13
    $region12: #{tpu_custom_call.1} parent=1 // pred_region
      %vm26 = vcmask 7168
      %27 = vst.msk [vmem:[%s1] sm:$0xff] %vm26, 0.0
      %28 = vst.msk [vmem:[%s2] sm:$0xff] %vm26, 0.0
    $region13: #{tpu_custom_call.1} parent=1 // pred_fallthru
      _
    %v29 = vld [vmem:[#allocation2] sm:$0xff]
    %v30 = vld [vmem:[#allocation2 + $0x8] sm:$0xff]
    %v31 = vld [vmem:[%s1] sm:$0xff]
    %v32 = vadd.f32 %v29, %v30
    %33 = vadd.xlane.f32.xlu0 %v32
    %v34 = vpop.xlane.xlu0 %33
    %v35 = vadd.f32 %v31, %v34
    %vm36 = vcmask 7168
    %37 = vst.msk [vmem:[%s1] sm:$0xff] %vm36, %v35
    %v38 = vld [vmem:[%s2] sm:$0xff]
    %v39 = vmul.f32 %v29, %v29
    %v40 = vmul.f32 %v30, %v30
    %v41 = vadd.f32 %v39, %v40
    %42 = vadd.xlane.f32.xlu0 %v41
    %v43 = vpop.xlane.xlu0 %42
    %v44 = vadd.f32 %v38, %v43
    %45 = vst.msk [vmem:[%s2] sm:$0xff] %vm36, %v44
    // Predicated region
    $region14: #{tpu_custom_call.1} parent=1 // pred_check
      _
    $region15: #{tpu_custom_call.1} parent=1 // pred_check_branch
      %47 = sbr.rel (0) target = $region17
    $region16: #{tpu_custom_call.1} parent=1 // pred_region
      _
    $region17: #{tpu_custom_call.1} parent=1 // pred_fallthru
      _
    // Predicated region
    $region18: #{tpu_custom_call.1} parent=1 // pred_check
      _
    $region19: #{tpu_custom_call.1} parent=1 // pred_check_branch
      %49 = sbr.rel (0) target = $region21
    $region20: #{tpu_custom_call.1} parent=1 // pred_region
      _
    $region21: #{tpu_custom_call.1} parent=1 // pred_fallthru
      _
    // Predicated region
    $region22: #{tpu_custom_call.1} parent=1 // pred_check
      _
    $region23: #{tpu_custom_call.1} parent=1 // pred_check_branch
      %51 = sbr.rel (0) target = $region25
    $region24: #{tpu_custom_call.1} parent=1 // pred_region
      _
    $region25: #{tpu_custom_call.1} parent=1 // pred_fallthru
      _
    // Predicated region
    $region26: #{tpu_custom_call.1} parent=1 // pred_check
      _
    $region27: #{tpu_custom_call.1} parent=1 // pred_check_branch
      %53 = sbr.rel (0) target = $region29
    $region28: #{tpu_custom_call.1} parent=1 // pred_region
      _
    $region29: #{tpu_custom_call.1} parent=1 // pred_fallthru
      _
    %54 = vsyncpa [#allocation3], 1

</llo_original>
